<compile_context>
chip_gen: v5e
topology: v5e:2x2
jax: 0.10.0
libtpu: 0.0.40
codegen_flags: <defaults>
</compile_context>

<pallas_src>
import math
import jax
import jax.numpy as jnp
from jax.experimental import pallas as pl
from jax.experimental.pallas import tpu as pltpu


# ---------------------------------------------------------------------------
# Kernel builders (generic over number of layers)
# ---------------------------------------------------------------------------

def _make_rows_kernel(n_layers):
    """Row layout: batch in sublanes, features in lanes.
    refs = (t_ref, w0, b0, w1, b1, ..., out_ref); w_i stored (in, out), b_i (1, out)."""

    def kernel(*refs):
        t_ref, out_ref = refs[0], refs[-1]
        h = t_ref[...]                                    # (tile_b, in_dim)
        for i in range(n_layers):
            w = refs[1 + 2 * i][...]
            b = refs[2 + 2 * i][...]
            if h.shape[1] == 1:
                # K=1 contraction == outer product: keep it on the VPU.
                h = h * w + b                             # (tile_b,1)*(1,H) -> (tile_b,H)
            else:
                h = jnp.dot(h, w, preferred_element_type=jnp.float32) + b
            if i < n_layers - 1:
                h = jnp.tanh(h)
        out_ref[...] = h.astype(out_ref.dtype)

    return kernel


def _make_lanes_kernel(n_layers):
    """Lane layout: batch in lanes (MXU N dim).
    refs = (tT_ref, w0, b0, ..., outT_ref); w_i stored PyTorch-style (out, in), b_i (out, 1)."""

    def kernel(*refs):
        tT_ref, out_ref = refs[0], refs[-1]
        h = tT_ref[...]                                   # (in_dim, tile_b)
        for i in range(n_layers):
            w = refs[1 + 2 * i][...]
            b = refs[2 + 2 * i][...]
            if h.shape[0] == 1:
                h = w * h + b                             # (H,1)*(1,tile_b) -> (H,tile_b), VPU only
            else:
                h = jnp.dot(w, h, preferred_element_type=jnp.float32) + b
            if i < n_layers - 1:
                h = jnp.tanh(h)
        out_ref[...] = h.astype(out_ref.dtype)            # lane-dense store

    return kernel


# ---------------------------------------------------------------------------
# Wrapper
# ---------------------------------------------------------------------------

_MAX_TILE = 2048  # rows per grid step (keeps well under the v7x 64 MiB VMEM)


def _choose_tiling(B):
    """Return (tile_b, use_lane_layout)."""
    if B % 256 == 0:
        # Lane-dense (batch-in-lanes) path; >=2 grid steps so v7x megacore can split
        # the batch across both TensorCores, tiles capped at _MAX_TILE rows.
        tile = B // 2
        while tile > _MAX_TILE and (tile // 2) % 128 == 0 and B % (tile // 2) == 0:
            tile //= 2
        return tile, True
    if B <= _MAX_TILE:
        # Small / irregular batch: a single tile covering the whole batch.
        return B, False
    # Large irregular batch: largest divisor of B that is a multiple of 8 and <= cap.
    for tile in range(_MAX_TILE - (_MAX_TILE % 8), 0, -8):
        if B % tile == 0:
            return tile, False
    return B, False  # no nice divisor: fall back to one big tile


def _resident(x):
    """Full block, constant index_map -> stays VMEM-resident across batch tiles."""
    nd = x.ndim
    return pl.BlockSpec(x.shape, lambda i: (0,) * nd)


def sir_pinn_forward(t, params):
    """t: (B, input_dim) float32.  params: list of (W, b) with W (in, out), b (1, out)."""
    n_layers = len(params)
    B, in_dim = t.shape
    out_dim = params[-1][0].shape[1]
    tile_b, use_lanes = _choose_tiling(B)
    grid = (B // tile_b,)

    if use_lanes:
        # Batch in lanes: out^T = W_L @ tanh(... tanh(W_0 * t^T + b_0) ...) + b_L.
        tT = t.T                                          # (in_dim, B); free for in_dim==1
        flat, in_specs = [], [pl.BlockSpec((in_dim, tile_b), lambda i: (0, i))]
        for (w, b) in params:
            wT, bT = w.T, b.T                             # (out, in), (out, 1)
            flat += [wT, bT]
            in_specs += [_resident(wT), _resident(bT)]
        outT = pl.pallas_call(
            _make_lanes_kernel(n_layers),
            out_shape=jax.ShapeDtypeStruct((out_dim, B), jnp.float32),
            grid=grid,
            in_specs=in_specs,
            out_specs=pl.BlockSpec((out_dim, tile_b), lambda i: (0, i)),
            compiler_params=pltpu.CompilerParams(dimension_semantics=("parallel",)),
        )(tT, *flat)
        return outT.T

    flat, in_specs = [], [pl.BlockSpec((tile_b, in_dim), lambda i: (i, 0))]
    for (w, b) in params:
        flat += [w, b]
        in_specs += [_resident(w), _resident(b)]
    return pl.pallas_call(
        _make_rows_kernel(n_layers),
        out_shape=jax.ShapeDtypeStruct((B, out_dim), jnp.float32),
        grid=grid,
        in_specs=in_specs,
        out_specs=pl.BlockSpec((tile_b, out_dim), lambda i: (i, 0)),
        compiler_params=pltpu.CompilerParams(dimension_semantics=("parallel",)),
    )(t, *flat)


# ---------------------------------------------------------------------------
# Params / reference
# ---------------------------------------------------------------------------

def init_params(key, input_dim, hidden_dims, output_dim):
    """Xavier-uniform weights (gain=1), zero biases — matches the PyTorch __init__."""
    dims = [input_dim] + list(hidden_dims) + [output_dim]
    params = []
    for fan_in, fan_out in zip(dims[:-1], dims[1:]):
        key, sub = jax.random.split(key)
        bound = math.sqrt(6.0 / (fan_in + fan_out))
        w = jax.random.uniform(sub, (fan_in, fan_out), jnp.float32, -bound, bound)
        b = jnp.zeros((1, fan_out), jnp.float32)
        params.append((w, b))
    return params


def reference_forward(t, params):
    h = t
    for i, (w, b) in enumerate(params):
        h = h @ w + b
        if i < len(params) - 1:
            h = jnp.tanh(h)
    return h


if __name__ == "__main__":
    # SIR PINN: input is time t (input_dim=1), output is (S, I, R) -> output_dim=3.
    input_dim, hidden_dims, output_dim = 1, [32, 32], 3

    key = jax.random.PRNGKey(0)
    key, k_small, k_big = jax.random.split(key, 3)
    params = init_params(key, input_dim, hidden_dims, output_dim)

    # beta / gamma are trainable scalars of the SIR model; unused in forward().
    beta = jnp.float32(1.0)
    gamma = jnp.float32(1.0)

    # Small batch: single-tile row layout (grid=(1,)).
    t_small = jax.random.uniform(k_small, (64, input_dim), jnp.float32, 0.0, 10.0)
    out_small = jax.block_until_ready(sir_pinn_forward(t_small, params))
    ref_small = reference_forward(t_small, params)
    assert out_small.shape == (64, output_dim)
    assert jnp.allclose(out_small, ref_small, atol=1e-5, rtol=1e-5)

    # Larger batch: batch-in-lanes layout, grid=(2,) so v7x megacore can use both TCs.
    t_big = jax.random.uniform(k_big, (512, input_dim), jnp.float32, 0.0, 10.0)
    out_big = jax.block_until_ready(sir_pinn_forward(t_big, params))
    ref_big = reference_forward(t_big, params)
    assert out_big.shape == (512, output_dim)
    assert jnp.allclose(out_big, ref_big, atol=1e-4, rtol=1e-4)

    print("KERNEL_OK")
</pallas_src>

<mosaic_0001>
module attributes {stable_mosaic.version = 11 : i64} {
  func.func @kernel(%arg0: i32, %arg1: memref<64x1xf32, #tpu.memory_space<vmem>>, %arg2: memref<1x32xf32, #tpu.memory_space<vmem>>, %arg3: memref<1x32xf32, #tpu.memory_space<vmem>>, %arg4: memref<32x32xf32, #tpu.memory_space<vmem>>, %arg5: memref<1x32xf32, #tpu.memory_space<vmem>>, %arg6: memref<32x3xf32, #tpu.memory_space<vmem>>, %arg7: memref<1x3xf32, #tpu.memory_space<vmem>>, %arg8: memref<64x3xf32, #tpu.memory_space<vmem>>) attributes {dimension_semantics = [#tpu.dimension_semantics<parallel>], iteration_bounds = array<i64: 1>, scalar_prefetch = 0 : i64, scratch_operands = 0 : i64, tpu.core_type = #tpu.core_type<tc>, window_params = [{transform_indices = @transform_0, window_bounds = array<i64: 64, 1>}, {pipeline_mode = #tpu.pipeline_mode<synchronous>, transform_indices = @transform_1, window_bounds = array<i64: 1, 32>}, {pipeline_mode = #tpu.pipeline_mode<synchronous>, transform_indices = @transform_2, window_bounds = array<i64: 1, 32>}, {pipeline_mode = #tpu.pipeline_mode<synchronous>, transform_indices = @transform_3, window_bounds = array<i64: 32, 32>}, {pipeline_mode = #tpu.pipeline_mode<synchronous>, transform_indices = @transform_4, window_bounds = array<i64: 1, 32>}, {pipeline_mode = #tpu.pipeline_mode<synchronous>, transform_indices = @transform_5, window_bounds = array<i64: 32, 3>}, {pipeline_mode = #tpu.pipeline_mode<synchronous>, transform_indices = @transform_6, window_bounds = array<i64: 1, 3>}, {transform_indices = @transform_7, window_bounds = array<i64: 64, 3>}]} {
    %c0 = arith.constant 0 : index
    %c0_0 = arith.constant 0 : index
    %0 = vector.load %arg1[%c0, %c0_0] : memref<64x1xf32, #tpu.memory_space<vmem>>, vector<64x1xf32>
    %c0_1 = arith.constant 0 : index
    %c0_2 = arith.constant 0 : index
    %1 = vector.load %arg2[%c0_1, %c0_2] : memref<1x32xf32, #tpu.memory_space<vmem>>, vector<1x32xf32>
    %c0_3 = arith.constant 0 : index
    %c0_4 = arith.constant 0 : index
    %2 = vector.load %arg3[%c0_3, %c0_4] : memref<1x32xf32, #tpu.memory_space<vmem>>, vector<1x32xf32>
    %3 = vector.broadcast %0 : vector<64x1xf32> to vector<64x32xf32>
    %4 = vector.broadcast %1 : vector<1x32xf32> to vector<64x32xf32>
    %5 = arith.mulf %3, %4 : vector<64x32xf32>
    %6 = vector.broadcast %2 : vector<1x32xf32> to vector<64x32xf32>
    %7 = arith.addf %5, %6 : vector<64x32xf32>
    %8 = math.tanh %7 : vector<64x32xf32>
    %c0_5 = arith.constant 0 : index
    %c0_6 = arith.constant 0 : index
    %9 = vector.load %arg4[%c0_5, %c0_6] : memref<32x32xf32, #tpu.memory_space<vmem>>, vector<32x32xf32>
    %c0_7 = arith.constant 0 : index
    %c0_8 = arith.constant 0 : index
    %10 = vector.load %arg5[%c0_7, %c0_8] : memref<1x32xf32, #tpu.memory_space<vmem>>, vector<1x32xf32>
    %cst = arith.constant dense<0.000000e+00> : vector<64x32xf32>
    %11 = tpu.matmul %8, %9, %cst {dimension_numbers = #tpu.dot_dimension_numbers<[1], [0], [0], [1], [0, 0, 1, 1], [], []>} : vector<64x32xf32>, vector<32x32xf32>, vector<64x32xf32> -> vector<64x32xf32>
    %12 = vector.broadcast %10 : vector<1x32xf32> to vector<64x32xf32>
    %13 = arith.addf %11, %12 : vector<64x32xf32>
    %14 = math.tanh %13 : vector<64x32xf32>
    %c0_9 = arith.constant 0 : index
    %c0_10 = arith.constant 0 : index
    %15 = vector.load %arg6[%c0_9, %c0_10] : memref<32x3xf32, #tpu.memory_space<vmem>>, vector<32x3xf32>
    %c0_11 = arith.constant 0 : index
    %c0_12 = arith.constant 0 : index
    %16 = vector.load %arg7[%c0_11, %c0_12] : memref<1x3xf32, #tpu.memory_space<vmem>>, vector<1x3xf32>
    %cst_13 = arith.constant dense<0.000000e+00> : vector<64x3xf32>
    %17 = tpu.matmul %14, %15, %cst_13 {dimension_numbers = #tpu.dot_dimension_numbers<[1], [0], [0], [1], [0, 0, 1, 1], [], []>} : vector<64x32xf32>, vector<32x3xf32>, vector<64x3xf32> -> vector<64x3xf32>
    %18 = vector.broadcast %16 : vector<1x3xf32> to vector<64x3xf32>
    %19 = arith.addf %17, %18 : vector<64x3xf32>
    %c0_14 = arith.constant 0 : index
    %c0_15 = arith.constant 0 : index
    %20 = vector.load %arg8[%c0_14, %c0_15] : memref<64x3xf32, #tpu.memory_space<vmem>>, vector<64x3xf32>
    tpu.vector_store %arg8[%c0_14, %c0_15], %19 {strides = array<i32>} : memref<64x3xf32, #tpu.memory_space<vmem>>, vector<64x3xf32>,
    return
  }
  func.func @transform_0(%arg0: i32) -> (i32, i32) {
    %c0_i32 = arith.constant 0 : i32
    %c0_i32_0 = arith.constant 0 : i32
    return %arg0, %c0_i32 : i32, i32
  }
  func.func @transform_1(%arg0: i32) -> (i32, i32) {
    %c0_i32 = arith.constant 0 : i32
    %c0_i32_0 = arith.constant 0 : i32
    %c0_i32_1 = arith.constant 0 : i32
    return %c0_i32, %c0_i32_0 : i32, i32
  }
  func.func @transform_2(%arg0: i32) -> (i32, i32) {
    %c0_i32 = arith.constant 0 : i32
    %c0_i32_0 = arith.constant 0 : i32
    %c0_i32_1 = arith.constant 0 : i32
    return %c0_i32, %c0_i32_0 : i32, i32
  }
  func.func @transform_3(%arg0: i32) -> (i32, i32) {
    %c0_i32 = arith.constant 0 : i32
    %c0_i32_0 = arith.constant 0 : i32
    %c0_i32_1 = arith.constant 0 : i32
    return %c0_i32, %c0_i32_0 : i32, i32
  }
  func.func @transform_4(%arg0: i32) -> (i32, i32) {
    %c0_i32 = arith.constant 0 : i32
    %c0_i32_0 = arith.constant 0 : i32
    %c0_i32_1 = arith.constant 0 : i32
    return %c0_i32, %c0_i32_0 : i32, i32
  }
  func.func @transform_5(%arg0: i32) -> (i32, i32) {
    %c0_i32 = arith.constant 0 : i32
    %c0_i32_0 = arith.constant 0 : i32
    %c0_i32_1 = arith.constant 0 : i32
    return %c0_i32, %c0_i32_0 : i32, i32
  }
  func.func @transform_6(%arg0: i32) -> (i32, i32) {
    %c0_i32 = arith.constant 0 : i32
    %c0_i32_0 = arith.constant 0 : i32
    %c0_i32_1 = arith.constant 0 : i32
    return %c0_i32, %c0_i32_0 : i32, i32
  }
  func.func @transform_7(%arg0: i32) -> (i32, i32) {
    %c0_i32 = arith.constant 0 : i32
    %c0_i32_0 = arith.constant 0 : i32
    return %arg0, %c0_i32 : i32, i32
  }
}

</mosaic_0001>

<llo_original>
// kernel: tpu_custom_call.1
$region0: #{tpu_custom_call.1}
  #allocation0 [shape = 'u32[]', space=smem, size = 0x4, offset = 0x4, fixed_abs, tag = 'smem constant byte address 0x4 - core index']
  #allocation1 [shape = 'u32[72,128]{1,0:T(1,128)}', space=vmem, size = 0x9000, scoped, tag = 'internal scratch']
  %s0 = inlined_call_operand.vmem [shape: f32[64,1], index: 0, kind: input, shape index: {}]
  %s1 = inlined_call_operand.vmem [shape: f32[1,32], index: 1, kind: input, shape index: {}]
  %s2 = inlined_call_operand.vmem [shape: f32[1,32], index: 2, kind: input, shape index: {}]
  %s3 = inlined_call_operand.vmem [shape: f32[32,32], index: 3, kind: input, shape index: {}]
  %s4 = inlined_call_operand.vmem [shape: f32[1,32], index: 4, kind: input, shape index: {}]
  %s5 = inlined_call_operand.vmem [shape: f32[32,3], index: 5, kind: input, shape index: {}]
  %s6 = inlined_call_operand.vmem [shape: f32[1,3], index: 6, kind: input, shape index: {}]
  %s7 = inlined_call_operand.vmem [shape: f32[64,3], index: 7, kind: output, shape index: {}]
  %s8 = sld [smem:[#allocation0]]
  $region38: #{tpu_custom_call.1} parent=0
    _
  %s10 = ssub.s32 1, %s8
  %s11 = scalar_select 0, %s10, %s8
  // Predicated region
  $region2: #{tpu_custom_call.1} parent=0 // pred_check
    _
  $region3: #{tpu_custom_call.1} parent=0 // pred_check_branch
    %13 = sbr.rel (0) target = $region5
  $region4: #{tpu_custom_call.1} parent=0 // pred_region
    _
  $region5: #{tpu_custom_call.1} parent=0 // pred_fallthru
    _
  // Predicated region
  $region6: #{tpu_custom_call.1} parent=0 // pred_check
    _
  $region7: #{tpu_custom_call.1} parent=0 // pred_check_branch
    %15 = sbr.rel (0) target = $region9
  $region8: #{tpu_custom_call.1} parent=0 // pred_region
    _
  $region9: #{tpu_custom_call.1} parent=0 // pred_fallthru
    _
  // Predicated region
  $region10: #{tpu_custom_call.1} parent=0 // pred_check
    _
  $region11: #{tpu_custom_call.1} parent=0 // pred_check_branch
    %17 = sbr.rel (0) target = $region13
  $region12: #{tpu_custom_call.1} parent=0 // pred_region
    _
  $region13: #{tpu_custom_call.1} parent=0 // pred_fallthru
    _
  // Predicated region
  $region14: #{tpu_custom_call.1} parent=0 // pred_check
    _
  $region15: #{tpu_custom_call.1} parent=0 // pred_check_branch
    %19 = sbr.rel (0) target = $region17
  $region16: #{tpu_custom_call.1} parent=0 // pred_region
    _
  $region17: #{tpu_custom_call.1} parent=0 // pred_fallthru
    _
  // Predicated region
  $region18: #{tpu_custom_call.1} parent=0 // pred_check
    _
  $region19: #{tpu_custom_call.1} parent=0 // pred_check_branch
    %21 = sbr.rel (0) target = $region21
  $region20: #{tpu_custom_call.1} parent=0 // pred_region
    _
  $region21: #{tpu_custom_call.1} parent=0 // pred_fallthru
    _
  // Predicated region
  $region22: #{tpu_custom_call.1} parent=0 // pred_check
    _
  $region23: #{tpu_custom_call.1} parent=0 // pred_check_branch
    %23 = sbr.rel (0) target = $region25
  $region24: #{tpu_custom_call.1} parent=0 // pred_region
    _
  $region25: #{tpu_custom_call.1} parent=0 // pred_fallthru
    _
  // Predicated region
  $region26: #{tpu_custom_call.1} parent=0 // pred_check
    _
  $region27: #{tpu_custom_call.1} parent=0 // pred_check_branch
    %25 = sbr.rel (0) target = $region29
  $region28: #{tpu_custom_call.1} parent=0 // pred_region
    _
  $region29: #{tpu_custom_call.1} parent=0 // pred_fallthru
    _
  %v26 = vld [vmem:[%s0] sm:$0xff]
  %v27 = vld [vmem:[%s0 + $0x8] sm:$0xff]
  %v28 = vld [vmem:[%s0 + $0x10] sm:$0xff]
  %v29 = vld [vmem:[%s0 + $0x18] sm:$0xff]
  %v30 = vld [vmem:[%s0 + $0x20] sm:$0xff]
  %v31 = vld [vmem:[%s0 + $0x28] sm:$0xff]
  %v32 = vld [vmem:[%s0 + $0x30] sm:$0xff]
  %v33 = vld [vmem:[%s0 + $0x38] sm:$0xff]
  %v34 = vld [vmem:[%s1] sm:$0x1]
  %v35 = vld [vmem:[%s2] sm:$0x1]
  %37 = vset.pattern.permute.xlu0 0
  %38 = vperm.xlu0 %37, %v26
  %v39 = vpop.permute.xlu0 %38
  %42 = vset.pattern.permute.xlu0 0
  %43 = vperm.xlu0 %42, %v27
  %v44 = vpop.permute.xlu0 %43
  %47 = vset.pattern.permute.xlu0 0
  %48 = vperm.xlu0 %47, %v28
  %v49 = vpop.permute.xlu0 %48
  %52 = vset.pattern.permute.xlu0 0
  %53 = vperm.xlu0 %52, %v29
  %v54 = vpop.permute.xlu0 %53
  %57 = vset.pattern.permute.xlu0 0
  %58 = vperm.xlu0 %57, %v30
  %v59 = vpop.permute.xlu0 %58
  %62 = vset.pattern.permute.xlu0 0
  %63 = vperm.xlu0 %62, %v31
  %v64 = vpop.permute.xlu0 %63
  %67 = vset.pattern.permute.xlu0 0
  %68 = vperm.xlu0 %67, %v32
  %v69 = vpop.permute.xlu0 %68
  %72 = vset.pattern.permute.xlu0 0
  %73 = vperm.xlu0 %72, %v33
  %v74 = vpop.permute.xlu0 %73
  %v77 = vperm.slane %v34, 0
  %v79 = vmul.f32 %v39, %v77
  %v80 = vmul.f32 %v44, %v77
  %v81 = vmul.f32 %v49, %v77
  %v82 = vmul.f32 %v54, %v77
  %v83 = vmul.f32 %v59, %v77
  %v84 = vmul.f32 %v64, %v77
  %v85 = vmul.f32 %v69, %v77
  %v86 = vmul.f32 %v74, %v77
  %v88 = vperm.slane %v35, 0
  %v90 = vadd.f32 %v79, %v88
  %v91 = vadd.f32 %v80, %v88
  %v92 = vadd.f32 %v81, %v88
  %v93 = vadd.f32 %v82, %v88
  %v94 = vadd.f32 %v83, %v88
  %v95 = vadd.f32 %v84, %v88
  %v96 = vadd.f32 %v85, %v88
  %v97 = vadd.f32 %v86, %v88
  %v98 = vtanh.pop %v90
  %v99 = vtanh.pop %v91
  %v100 = vtanh.pop %v92
  %v101 = vtanh.pop %v93
  %v102 = vtanh.pop %v94
  %v103 = vtanh.pop %v95
  %v104 = vtanh.pop %v96
  %v105 = vtanh.pop %v97
  %v106 = vld [vmem:[%s3] sm:$0xff]
  %v107 = vld [vmem:[%s3 + $0x8] sm:$0xff]
  %v108 = vld [vmem:[%s3 + $0x10] sm:$0xff]
  %v109 = vld [vmem:[%s3 + $0x18] sm:$0xff]
  %v110 = vld [vmem:[%s4] sm:$0x1]
  %v112 = vperm.slane %v110, 0
  %vm114 = vcmask 261120
  %v116 = vsel %vm114, %v98, 0
  %v119 = vsel %vm114, %v99, 0
  %v122 = vsel %vm114, %v100, 0
  %v125 = vsel %vm114, %v101, 0
  %v128 = vsel %vm114, %v102, 0
  %v131 = vsel %vm114, %v103, 0
  %v134 = vsel %vm114, %v104, 0
  %v137 = vsel %vm114, %v105, 0
  %139 = vmatpush.msra.mxu0 0.0
  %140 = vmatpush.msra.mxu0 0.0
  %141 = vmatpush.msra.mxu0 0.0
  %142 = vmatpush.msra.mxu0 0.0
  %143 = vmatpush.msra.mxu0 0.0
  %144 = vmatpush.msra.mxu0 0.0
  %145 = vmatpush.msra.mxu0 0.0
  %146 = vmatpush.msra.mxu0 0.0
  %147 = vmatpush.msra.mxu0 0.0
  %148 = vmatpush.msra.mxu0 0.0
  %149 = vmatpush.msra.mxu0 0.0
  %150 = vmatpush.msra.mxu0 0.0
  %151 = vmatpush.msra.mxu0 %v109
  %152 = vmatpush.msra.mxu0 %v108
  %153 = vmatpush.msra.mxu0 %v107
  %154 = vmatpush.msra.mxu0 %v106
  %155 = vmatmul.f32.gmra.mxu0 %v116
  %v156 = vpop.f32.mrf.mxu0
  %v157 = vadd.f32 %v112, %v156
  %158 = vmatmul.f32.gmra.mxu0 %v119
  %v159 = vpop.f32.mrf.mxu0
  %v160 = vadd.f32 %v112, %v159
  %161 = vmatmul.f32.gmra.mxu0 %v122
  %v162 = vpop.f32.mrf.mxu0
  %v163 = vadd.f32 %v112, %v162
  %164 = vmatmul.f32.gmra.mxu0 %v125
  %v165 = vpop.f32.mrf.mxu0
  %v166 = vadd.f32 %v112, %v165
  %167 = vmatmul.f32.gmra.mxu0 %v128
  %v168 = vpop.f32.mrf.mxu0
  %v169 = vadd.f32 %v112, %v168
  %170 = vmatmul.f32.gmra.mxu0 %v131
  %v171 = vpop.f32.mrf.mxu0
  %v172 = vadd.f32 %v112, %v171
  %173 = vmatmul.f32.gmra.mxu0 %v134
  %v174 = vpop.f32.mrf.mxu0
  %v175 = vadd.f32 %v112, %v174
  %176 = vmatmul.f32.gmra.mxu0 %v137
  %v177 = vpop.f32.mrf.mxu0
  %v178 = vadd.f32 %v112, %v177
  %179 = vdwg.mxu0
  %v180 = vtanh.pop %v157
  %v181 = vtanh.pop %v160
  %v182 = vtanh.pop %v163
  %v183 = vtanh.pop %v166
  %v184 = vtanh.pop %v169
  %v185 = vtanh.pop %v172
  %v186 = vtanh.pop %v175
  %v187 = vtanh.pop %v178
  %v188 = vld [vmem:[%s5] sm:$0xff]
  %v189 = vld [vmem:[%s5 + $0x8] sm:$0xff]
  %v190 = vld [vmem:[%s5 + $0x10] sm:$0xff]
  %v191 = vld [vmem:[%s5 + $0x18] sm:$0xff]
  %v192 = vld [vmem:[%s6] sm:$0x1]
  %v194 = vperm.slane %v192, 0
  %v197 = vsel %vm114, %v180, 0
  %v200 = vsel %vm114, %v181, 0
  %v203 = vsel %vm114, %v182, 0
  %v206 = vsel %vm114, %v183, 0
  %v209 = vsel %vm114, %v184, 0
  %v212 = vsel %vm114, %v185, 0
  %v215 = vsel %vm114, %v186, 0
  %v218 = vsel %vm114, %v187, 0
  %220 = vmatpush.msra.mxu0 0.0
  %221 = vmatpush.msra.mxu0 0.0
  %222 = vmatpush.msra.mxu0 0.0
  %223 = vmatpush.msra.mxu0 0.0
  %224 = vmatpush.msra.mxu0 0.0
  %225 = vmatpush.msra.mxu0 0.0
  %226 = vmatpush.msra.mxu0 0.0
  %227 = vmatpush.msra.mxu0 0.0
  %228 = vmatpush.msra.mxu0 0.0
  %229 = vmatpush.msra.mxu0 0.0
  %230 = vmatpush.msra.mxu0 0.0
  %231 = vmatpush.msra.mxu0 0.0
  %232 = vmatpush.msra.mxu0 %v191
  %233 = vmatpush.msra.mxu0 %v190
  %234 = vmatpush.msra.mxu0 %v189
  %235 = vmatpush.msra.mxu0 %v188
  %236 = vmatmul.f32.gmra.mxu0 %v197
  %v237 = vpop.f32.mrf.mxu0
  %v238 = vadd.f32 %v194, %v237
  %239 = vmatmul.f32.gmra.mxu0 %v200
  %v240 = vpop.f32.mrf.mxu0
  %v241 = vadd.f32 %v194, %v240
  %242 = vmatmul.f32.gmra.mxu0 %v203
  %v243 = vpop.f32.mrf.mxu0
  %v244 = vadd.f32 %v194, %v243
  %245 = vmatmul.f32.gmra.mxu0 %v206
  %v246 = vpop.f32.mrf.mxu0
  %v247 = vadd.f32 %v194, %v246
  %248 = vmatmul.f32.gmra.mxu0 %v209
  %v249 = vpop.f32.mrf.mxu0
  %v250 = vadd.f32 %v194, %v249
  %251 = vmatmul.f32.gmra.mxu0 %v212
  %v252 = vpop.f32.mrf.mxu0
  %v253 = vadd.f32 %v194, %v252
  %254 = vmatmul.f32.gmra.mxu0 %v215
  %v255 = vpop.f32.mrf.mxu0
  %v256 = vadd.f32 %v194, %v255
  %257 = vmatmul.f32.gmra.mxu0 %v218
  %v258 = vpop.f32.mrf.mxu0
  %v259 = vadd.f32 %v194, %v258
  %260 = vdwg.mxu0
  %vm261 = vcmask 23552
  %262 = vst.msk [vmem:[%s7] sm:$0xff] %vm261, %v238
  %263 = vst.msk [vmem:[%s7 + $0x8] sm:$0xff] %vm261, %v241
  %264 = vst.msk [vmem:[%s7 + $0x10] sm:$0xff] %vm261, %v244
  %265 = vst.msk [vmem:[%s7 + $0x18] sm:$0xff] %vm261, %v247
  %266 = vst.msk [vmem:[%s7 + $0x20] sm:$0xff] %vm261, %v250
  %267 = vst.msk [vmem:[%s7 + $0x28] sm:$0xff] %vm261, %v253
  %268 = vst.msk [vmem:[%s7 + $0x30] sm:$0xff] %vm261, %v256
  %269 = vst.msk [vmem:[%s7 + $0x38] sm:$0xff] %vm261, %v259
  // Predicated region
  $region30: #{tpu_custom_call.1} parent=0 // pred_check
    _
  $region31: #{tpu_custom_call.1} parent=0 // pred_check_branch
    %271 = sbr.rel (0) target = $region33
  $region32: #{tpu_custom_call.1} parent=0 // pred_region
    _
  $region33: #{tpu_custom_call.1} parent=0 // pred_fallthru
    _
  // Predicated region
  $region34: #{tpu_custom_call.1} parent=0 // pred_check
    _
  $region35: #{tpu_custom_call.1} parent=0 // pred_check_branch
    %273 = sbr.rel (0) target = $region37
  $region36: #{tpu_custom_call.1} parent=0 // pred_region
    _
  $region37: #{tpu_custom_call.1} parent=0 // pred_fallthru
    _

</llo_original>
